<compile_context>
chip_gen: v7x
topology: tpu7x:2x2x1
jax: 0.10.0
libtpu: 0.0.40
codegen_flags: <defaults>
</compile_context>

<pallas_src>
import jax
import jax.numpy as jnp
from jax.experimental import pallas as pl
from jax.experimental.pallas import tpu as pltpu


def _round_up(n, m):
    return ((n + m - 1) // m) * m


# ---------------------------------------------------------------------------
# Kernels
# ---------------------------------------------------------------------------
def _fused_kernel(alphas_ref,                      # SMEM (2,): [emb_alpha, head_alpha]
                  x_ref, w1_ref, b1_ref, w2_ref, b2_ref, fcw_ref, fcb_ref,
                  scores_ref, emb_ref):
    """Embedding MLP + PReLU + fc1 + log_softmax, one batch tile per step."""
    a_emb = alphas_ref[0]
    a_head = alphas_ref[1]

    x = x_ref[...].astype(jnp.float32)                              # (TB, D_in)

    # embedding_net: Linear -> PReLU -> Linear
    h = jnp.dot(x, w1_ref[...], preferred_element_type=jnp.float32) + b1_ref[...]
    h = jnp.where(h > 0, h, a_emb * h)                              # PReLU (shared alpha)
    emb = jnp.dot(h, w2_ref[...], preferred_element_type=jnp.float32) + b2_ref[...]
    emb_ref[...] = emb.astype(emb_ref.dtype)                        # (TB, 2)

    # classification head: PReLU -> fc1 -> log_softmax(dim=-1)
    e = jnp.where(emb > 0, emb, a_head * emb)
    z = jnp.dot(e, fcw_ref[...], preferred_element_type=jnp.float32) + fcb_ref[...]
    m = jnp.max(z, axis=-1, keepdims=True)                          # stable log_softmax
    s = z - m
    lse = jnp.log(jnp.sum(jnp.exp(s), axis=-1, keepdims=True))
    scores_ref[...] = (s - lse).astype(scores_ref.dtype)            # (TB, 2*n_classes)


def _head_kernel(alphas_ref,                       # SMEM (1,): [head_alpha]
                 x_ref, w_ref, b_ref, out_ref):
    """aug_sample branch: PReLU -> Linear(2, 2*n_classes) -> log_softmax."""
    a = alphas_ref[0]
    x = x_ref[...].astype(jnp.float32)                              # (TB, 2)
    xa = jnp.where(x > 0, x, a * x)
    z = jnp.dot(xa, w_ref[...], preferred_element_type=jnp.float32) + b_ref[...]
    m = jnp.max(z, axis=-1, keepdims=True)
    s = z - m
    lse = jnp.log(jnp.sum(jnp.exp(s), axis=-1, keepdims=True))
    out_ref[...] = (s - lse).astype(out_ref.dtype)


# ---------------------------------------------------------------------------
# Wrappers
# ---------------------------------------------------------------------------
def _fused_forward(params, x_nchw, *, tb=1024):
    """Returns (scores, emb) for the embedding path, fully fused."""
    B = x_nchw.shape[0]
    x_flat = x_nchw.reshape(B, -1).astype(jnp.float32)              # flatten NCHW
    d_in = x_flat.shape[1]

    w1_t, b1 = params["emb_w1_t"], params["emb_b1"]
    w2_t, b2 = params["emb_w2_t"], params["emb_b2"]
    fcw, fcb = params["fc1_w_t"], params["fc1_b"]

    # Pad the hidden dim to a full lane width (numerically a no-op).
    d_hidden = w1_t.shape[1]
    h_pad = _round_up(d_hidden, 128)
    if h_pad != d_hidden:
        w1_t = jnp.pad(w1_t, ((0, 0), (0, h_pad - d_hidden)))
        b1 = jnp.pad(b1, ((0, 0), (0, h_pad - d_hidden)))
        w2_t = jnp.pad(w2_t, ((0, h_pad - d_hidden), (0, 0)))

    emb_dim = w2_t.shape[1]
    out_dim = fcw.shape[1]

    # Batch tiling: TB rows per grid step (sublane-aligned), pad B if needed.
    TB = min(tb, _round_up(B, 8))
    pad_B = _round_up(B, TB)
    if pad_B != B:
        x_flat = jnp.pad(x_flat, ((0, pad_B - B), (0, 0)))

    alphas = jnp.concatenate([
        jnp.reshape(params["emb_prelu_alpha"], (1,)),
        jnp.reshape(params["prelu_alpha"], (1,)),
    ]).astype(jnp.float32)

    scores, emb = pl.pallas_call(
        _fused_kernel,
        out_shape=(jax.ShapeDtypeStruct((pad_B, out_dim), jnp.float32),
                   jax.ShapeDtypeStruct((pad_B, emb_dim), jnp.float32)),
        grid_spec=pltpu.PrefetchScalarGridSpec(
            num_scalar_prefetch=1,
            grid=(pad_B // TB,),
            in_specs=[
                pl.BlockSpec((TB, d_in), lambda i, a: (i, 0)),        # x tile
                pl.BlockSpec((d_in, h_pad), lambda i, a: (0, 0)),     # w1 (resident)
                pl.BlockSpec((1, h_pad), lambda i, a: (0, 0)),        # b1
                pl.BlockSpec((h_pad, emb_dim), lambda i, a: (0, 0)),  # w2
                pl.BlockSpec((1, emb_dim), lambda i, a: (0, 0)),      # b2
                pl.BlockSpec((emb_dim, out_dim), lambda i, a: (0, 0)),  # fc1 W^T
                pl.BlockSpec((1, out_dim), lambda i, a: (0, 0)),      # fc1 b
            ],
            out_specs=[
                pl.BlockSpec((TB, out_dim), lambda i, a: (i, 0)),
                pl.BlockSpec((TB, emb_dim), lambda i, a: (i, 0)),
            ],
        ),
        compiler_params=pltpu.CompilerParams(
            dimension_semantics=("parallel",),          # megacore on v7x
            vmem_limit_bytes=48 * 1024 * 1024,          # stay under v7x 64 MiB VMEM
        ),
    )(alphas, x_flat, w1_t, b1, w2_t, b2, fcw, fcb)

    return scores[:B], emb[:B]


def classification_head(aug_sample, alpha, fc1_w_t, fc1_b, *, tb=1024):
    """aug_sample branch (small head only), batch-gridded."""
    B, d = aug_sample.shape
    out_dim = fc1_w_t.shape[1]

    TB = min(tb, _round_up(B, 8))
    pad_B = _round_up(B, TB)
    aug = aug_sample.astype(jnp.float32)
    if pad_B != B:
        aug = jnp.pad(aug, ((0, pad_B - B), (0, 0)))

    alphas = jnp.reshape(alpha, (1,)).astype(jnp.float32)

    out = pl.pallas_call(
        _head_kernel,
        out_shape=jax.ShapeDtypeStruct((pad_B, out_dim), jnp.float32),
        grid_spec=pltpu.PrefetchScalarGridSpec(
            num_scalar_prefetch=1,
            grid=(pad_B // TB,),
            in_specs=[
                pl.BlockSpec((TB, d), lambda i, a: (i, 0)),
                pl.BlockSpec((d, out_dim), lambda i, a: (0, 0)),
                pl.BlockSpec((1, out_dim), lambda i, a: (0, 0)),
            ],
            out_specs=pl.BlockSpec((TB, out_dim), lambda i, a: (i, 0)),
        ),
        compiler_params=pltpu.CompilerParams(
            dimension_semantics=("parallel",)),
    )(alphas, aug, fc1_w_t, fc1_b)
    return out[:B]


def classification_net_forward(params, x, aug_sample, *, tb=1024):
    """Mirrors ClassificationNet.forward(x, aug_sample)."""
    if aug_sample.shape[0] != 0:                        # PyTorch: len(aug_sample) != 0
        return classification_head(aug_sample, params["prelu_alpha"],
                                   params["fc1_w_t"], params["fc1_b"], tb=tb)
    scores, emb = _fused_forward(params, x, tb=tb)
    return scores, emb


# ---------------------------------------------------------------------------
# Deterministic parameter init (PyTorch-style Linear init, PReLU alpha=0.25)
# ---------------------------------------------------------------------------
def init_params(key, n_classes, d_in, d_hidden):
    ks = jax.random.split(key, 6)

    def linear(kw, kb, fan_in, fan_out):
        bound = 1.0 / jnp.sqrt(fan_in)
        w_t = jax.random.uniform(kw, (fan_in, fan_out), jnp.float32, -bound, bound)
        b = jax.random.uniform(kb, (1, fan_out), jnp.float32, -bound, bound)
        return w_t, b

    emb_w1_t, emb_b1 = linear(ks[0], ks[1], d_in, d_hidden)
    emb_w2_t, emb_b2 = linear(ks[2], ks[3], d_hidden, 2)
    fc1_w_t, fc1_b = linear(ks[4], ks[5], 2, 2 * n_classes)

    return dict(
        emb_w1_t=emb_w1_t, emb_b1=emb_b1,
        emb_prelu_alpha=jnp.full((1, 1), 0.25, jnp.float32),
        emb_w2_t=emb_w2_t, emb_b2=emb_b2,
        prelu_alpha=jnp.full((1, 1), 0.25, jnp.float32),    # nn.PReLU() default
        fc1_w_t=fc1_w_t, fc1_b=fc1_b,
    )


# ---------------------------------------------------------------------------
# Pure-JAX reference (for correctness check)
# ---------------------------------------------------------------------------
def _ref_forward(params, x, aug_sample):
    def prelu(v, a):
        return jnp.where(v > 0, v, a * v)

    def head(v):
        v = prelu(v, params["prelu_alpha"][0, 0])
        z = v @ params["fc1_w_t"] + params["fc1_b"]
        return jax.nn.log_softmax(z, axis=-1)

    if aug_sample.shape[0] != 0:
        return head(aug_sample)
    xf = x.reshape(x.shape[0], -1)
    h = prelu(xf @ params["emb_w1_t"] + params["emb_b1"],
              params["emb_prelu_alpha"][0, 0])
    emb = h @ params["emb_w2_t"] + params["emb_b2"]
    return head(emb), emb


# ---------------------------------------------------------------------------
if __name__ == "__main__":
    key = jax.random.PRNGKey(0)
    k_par, k_x, k_aug, k_x2 = jax.random.split(key, 4)

    B, C, H, W = 2, 4, 16, 16
    n_classes = 4
    d_in, d_hidden = C * H * W, 32

    params = init_params(k_par, n_classes, d_in, d_hidden)
    x = jax.random.normal(k_x, (B, C, H, W), jnp.float32)
    aug_sample = jax.random.normal(k_aug, (B, 2), jnp.float32)
    empty_aug = jnp.zeros((0, 2), jnp.float32)

    # Branch 1: embedding path (empty aug_sample) -> (scores, emb), fused kernel.
    scores, emb = classification_net_forward(params, x, empty_aug)
    scores = jax.block_until_ready(scores)
    emb = jax.block_until_ready(emb)

    # Branch 2: aug_sample path -> aug_score.
    aug_score = classification_net_forward(params, x, aug_sample)
    aug_score = jax.block_until_ready(aug_score)

    # Numerical checks against pure-JAX reference.
    ref_scores, ref_emb = _ref_forward(params, x, empty_aug)
    ref_aug = _ref_forward(params, x, aug_sample)
    assert jnp.allclose(scores, ref_scores, atol=1e-5), "scores mismatch"
    assert jnp.allclose(emb, ref_emb, atol=1e-5), "emb mismatch"
    assert jnp.allclose(aug_score, ref_aug, atol=1e-5), "aug_score mismatch"
    assert scores.shape == (B, 2 * n_classes) and emb.shape == (B, 2)
    assert aug_score.shape == (B, 2 * n_classes)

    # Exercise a multi-step batch grid (TB=8 -> 3 grid steps, padded batch).
    B2 = 20
    x2 = jax.random.normal(k_x2, (B2, C, H, W), jnp.float32)
    scores2, emb2 = classification_net_forward(params, x2, empty_aug, tb=8)
    scores2 = jax.block_until_ready(scores2)
    emb2 = jax.block_until_ready(emb2)
    ref_scores2, ref_emb2 = _ref_forward(params, x2, empty_aug)
    assert jnp.allclose(scores2, ref_scores2, atol=1e-5), "tiled scores mismatch"
    assert jnp.allclose(emb2, ref_emb2, atol=1e-5), "tiled emb mismatch"
    assert scores2.shape == (B2, 2 * n_classes) and emb2.shape == (B2, 2)

    print("KERNEL_OK")
</pallas_src>

<mosaic_0001>
module attributes {stable_mosaic.version = 11 : i64} {
  func.func @_fused_kernel(%arg0: i32, %arg1: memref<2xf32, #tpu.memory_space<smem>>, %arg2: memref<8x1024xf32, #tpu.memory_space<vmem>>, %arg3: memref<1024x128xf32, #tpu.memory_space<vmem>>, %arg4: memref<1x128xf32, #tpu.memory_space<vmem>>, %arg5: memref<128x2xf32, #tpu.memory_space<vmem>>, %arg6: memref<1x2xf32, #tpu.memory_space<vmem>>, %arg7: memref<2x8xf32, #tpu.memory_space<vmem>>, %arg8: memref<1x8xf32, #tpu.memory_space<vmem>>, %arg9: memref<8x8xf32, #tpu.memory_space<vmem>>, %arg10: memref<8x2xf32, #tpu.memory_space<vmem>>) attributes {dimension_semantics = [#tpu.dimension_semantics<parallel>], iteration_bounds = array<i64: 1>, scalar_prefetch = 1 : i64, scratch_operands = 0 : i64, tpu.core_type = #tpu.core_type<tc>, window_params = [{transform_indices = @transform_0, window_bounds = array<i64: 8, 1024>}, {pipeline_mode = #tpu.pipeline_mode<synchronous>, transform_indices = @transform_1, window_bounds = array<i64: 1024, 128>}, {pipeline_mode = #tpu.pipeline_mode<synchronous>, transform_indices = @transform_2, window_bounds = array<i64: 1, 128>}, {pipeline_mode = #tpu.pipeline_mode<synchronous>, transform_indices = @transform_3, window_bounds = array<i64: 128, 2>}, {pipeline_mode = #tpu.pipeline_mode<synchronous>, transform_indices = @transform_4, window_bounds = array<i64: 1, 2>}, {pipeline_mode = #tpu.pipeline_mode<synchronous>, transform_indices = @transform_5, window_bounds = array<i64: 2, 8>}, {pipeline_mode = #tpu.pipeline_mode<synchronous>, transform_indices = @transform_6, window_bounds = array<i64: 1, 8>}, {transform_indices = @transform_7, window_bounds = array<i64: 8, 8>}, {transform_indices = @transform_8, window_bounds = array<i64: 8, 2>}]} {
    %c0 = arith.constant 0 : index
    %0 = memref.load %arg1[%c0] : memref<2xf32, #tpu.memory_space<smem>>
    %c1 = arith.constant 1 : index
    %1 = memref.load %arg1[%c1] : memref<2xf32, #tpu.memory_space<smem>>
    %c0_0 = arith.constant 0 : index
    %c0_1 = arith.constant 0 : index
    %2 = vector.load %arg2[%c0_0, %c0_1] : memref<8x1024xf32, #tpu.memory_space<vmem>>, vector<8x1024xf32>
    %c0_2 = arith.constant 0 : index
    %c0_3 = arith.constant 0 : index
    %3 = vector.load %arg3[%c0_2, %c0_3] : memref<1024x128xf32, #tpu.memory_space<vmem>>, vector<1024x128xf32>
    %cst = arith.constant dense<0.000000e+00> : vector<8x128xf32>
    %4 = tpu.matmul %2, %3, %cst {dimension_numbers = #tpu.dot_dimension_numbers<[1], [0], [0], [1], [0, 0, 1, 1], [], []>} : vector<8x1024xf32>, vector<1024x128xf32>, vector<8x128xf32> -> vector<8x128xf32>
    %c0_4 = arith.constant 0 : index
    %c0_5 = arith.constant 0 : index
    %5 = vector.load %arg4[%c0_4, %c0_5] : memref<1x128xf32, #tpu.memory_space<vmem>>, vector<1x128xf32>
    %6 = vector.broadcast %5 : vector<1x128xf32> to vector<8x128xf32>
    %7 = arith.addf %4, %6 : vector<8x128xf32>
    %cst_6 = arith.constant 0.000000e+00 : f32
    %8 = vector.broadcast %cst_6 : f32 to vector<8x128xf32>
    %9 = arith.cmpf ogt, %7, %8 : vector<8x128xf32>
    %10 = vector.broadcast %0 : f32 to vector<8x128xf32>
    %11 = arith.mulf %10, %7 : vector<8x128xf32>
    %12 = arith.select %9, %7, %11 : vector<8x128xi1>, vector<8x128xf32>
    %c0_7 = arith.constant 0 : index
    %c0_8 = arith.constant 0 : index
    %13 = vector.load %arg5[%c0_7, %c0_8] : memref<128x2xf32, #tpu.memory_space<vmem>>, vector<128x2xf32>
    %cst_9 = arith.constant dense<0.000000e+00> : vector<8x2xf32>
    %14 = tpu.matmul %12, %13, %cst_9 {dimension_numbers = #tpu.dot_dimension_numbers<[1], [0], [0], [1], [0, 0, 1, 1], [], []>} : vector<8x128xf32>, vector<128x2xf32>, vector<8x2xf32> -> vector<8x2xf32>
    %c0_10 = arith.constant 0 : index
    %c0_11 = arith.constant 0 : index
    %15 = vector.load %arg6[%c0_10, %c0_11] : memref<1x2xf32, #tpu.memory_space<vmem>>, vector<1x2xf32>
    %16 = vector.broadcast %15 : vector<1x2xf32> to vector<8x2xf32>
    %17 = arith.addf %14, %16 : vector<8x2xf32>
    %c0_12 = arith.constant 0 : index
    %c0_13 = arith.constant 0 : index
    %18 = vector.load %arg10[%c0_12, %c0_13] : memref<8x2xf32, #tpu.memory_space<vmem>>, vector<8x2xf32>
    tpu.vector_store %arg10[%c0_12, %c0_13], %17 {strides = array<i32>} : memref<8x2xf32, #tpu.memory_space<vmem>>, vector<8x2xf32>,
    %cst_14 = arith.constant 0.000000e+00 : f32
    %19 = vector.broadcast %cst_14 : f32 to vector<8x2xf32>
    %20 = arith.cmpf ogt, %17, %19 : vector<8x2xf32>
    %21 = vector.broadcast %1 : f32 to vector<8x2xf32>
    %22 = arith.mulf %21, %17 : vector<8x2xf32>
    %23 = arith.select %20, %17, %22 : vector<8x2xi1>, vector<8x2xf32>
    %c0_15 = arith.constant 0 : index
    %c0_16 = arith.constant 0 : index
    %24 = vector.load %arg7[%c0_15, %c0_16] : memref<2x8xf32, #tpu.memory_space<vmem>>, vector<2x8xf32>
    %cst_17 = arith.constant dense<0.000000e+00> : vector<8x8xf32>
    %25 = tpu.matmul %23, %24, %cst_17 {dimension_numbers = #tpu.dot_dimension_numbers<[1], [0], [0], [1], [0, 0, 1, 1], [], []>} : vector<8x2xf32>, vector<2x8xf32>, vector<8x8xf32> -> vector<8x8xf32>
    %c0_18 = arith.constant 0 : index
    %c0_19 = arith.constant 0 : index
    %26 = vector.load %arg8[%c0_18, %c0_19] : memref<1x8xf32, #tpu.memory_space<vmem>>, vector<1x8xf32>
    %27 = vector.broadcast %26 : vector<1x8xf32> to vector<8x8xf32>
    %28 = arith.addf %25, %27 : vector<8x8xf32>
    %cst_20 = arith.constant dense<0xFF800000> : vector<8xf32>
    %29 = vector.multi_reduction <maximumf>, %28, %cst_20 [1] : vector<8x8xf32> to vector<8xf32>
    %30 = vector.shape_cast %29 : vector<8xf32> to vector<8x1xf32>
    %31 = vector.broadcast %30 : vector<8x1xf32> to vector<8x8xf32>
    %32 = arith.subf %28, %31 : vector<8x8xf32>
    %33 = math.exp %32 : vector<8x8xf32>
    %cst_21 = arith.constant dense<0.000000e+00> : vector<8xf32>
    %34 = vector.multi_reduction <add>, %33, %cst_21 [1] : vector<8x8xf32> to vector<8xf32>
    %35 = vector.shape_cast %34 : vector<8xf32> to vector<8x1xf32>
    %36 = math.log %35 : vector<8x1xf32>
    %37 = vector.broadcast %36 : vector<8x1xf32> to vector<8x8xf32>
    %38 = arith.subf %32, %37 : vector<8x8xf32>
    %c0_22 = arith.constant 0 : index
    %c0_23 = arith.constant 0 : index
    %39 = vector.load %arg9[%c0_22, %c0_23] : memref<8x8xf32, #tpu.memory_space<vmem>>, vector<8x8xf32>
    tpu.vector_store %arg9[%c0_22, %c0_23], %38 {strides = array<i32>} : memref<8x8xf32, #tpu.memory_space<vmem>>, vector<8x8xf32>,
    return
  }
  func.func @transform_0(%arg0: i32, %arg1: memref<2xf32, #tpu.memory_space<smem>>) -> (i32, i32) {
    %c0_i32 = arith.constant 0 : i32
    %c0_i32_0 = arith.constant 0 : i32
    return %arg0, %c0_i32 : i32, i32
  }
  func.func @transform_1(%arg0: i32, %arg1: memref<2xf32, #tpu.memory_space<smem>>) -> (i32, i32) {
    %c0_i32 = arith.constant 0 : i32
    %c0_i32_0 = arith.constant 0 : i32
    %c0_i32_1 = arith.constant 0 : i32
    return %c0_i32, %c0_i32_0 : i32, i32
  }
  func.func @transform_2(%arg0: i32, %arg1: memref<2xf32, #tpu.memory_space<smem>>) -> (i32, i32) {
    %c0_i32 = arith.constant 0 : i32
    %c0_i32_0 = arith.constant 0 : i32
    %c0_i32_1 = arith.constant 0 : i32
    return %c0_i32, %c0_i32_0 : i32, i32
  }
  func.func @transform_3(%arg0: i32, %arg1: memref<2xf32, #tpu.memory_space<smem>>) -> (i32, i32) {
    %c0_i32 = arith.constant 0 : i32
    %c0_i32_0 = arith.constant 0 : i32
    %c0_i32_1 = arith.constant 0 : i32
    return %c0_i32, %c0_i32_0 : i32, i32
  }
  func.func @transform_4(%arg0: i32, %arg1: memref<2xf32, #tpu.memory_space<smem>>) -> (i32, i32) {
    %c0_i32 = arith.constant 0 : i32
    %c0_i32_0 = arith.constant 0 : i32
    %c0_i32_1 = arith.constant 0 : i32
    return %c0_i32, %c0_i32_0 : i32, i32
  }
  func.func @transform_5(%arg0: i32, %arg1: memref<2xf32, #tpu.memory_space<smem>>) -> (i32, i32) {
    %c0_i32 = arith.constant 0 : i32
    %c0_i32_0 = arith.constant 0 : i32
    %c0_i32_1 = arith.constant 0 : i32
    return %c0_i32, %c0_i32_0 : i32, i32
  }
  func.func @transform_6(%arg0: i32, %arg1: memref<2xf32, #tpu.memory_space<smem>>) -> (i32, i32) {
    %c0_i32 = arith.constant 0 : i32
    %c0_i32_0 = arith.constant 0 : i32
    %c0_i32_1 = arith.constant 0 : i32
    return %c0_i32, %c0_i32_0 : i32, i32
  }
  func.func @transform_7(%arg0: i32, %arg1: memref<2xf32, #tpu.memory_space<smem>>) -> (i32, i32) {
    %c0_i32 = arith.constant 0 : i32
    %c0_i32_0 = arith.constant 0 : i32
    return %arg0, %c0_i32 : i32, i32
  }
  func.func @transform_8(%arg0: i32, %arg1: memref<2xf32, #tpu.memory_space<smem>>) -> (i32, i32) {
    %c0_i32 = arith.constant 0 : i32
    %c0_i32_0 = arith.constant 0 : i32
    return %arg0, %c0_i32 : i32, i32
  }
}

</mosaic_0001>

<llo_original>
// kernel: tpu_custom_call.1
$region0: #{tpu_custom_call.1}
  #allocation0 [shape = 'u32[]', space=smem, size = 0x4, offset = 0x4, fixed_abs, tag = 'smem constant byte address 0x4 - core index']
  #allocation1 [shape = 'u32[144,128]{1,0:T(1,128)}', space=vmem, size = 0x12000, scoped, tag = 'internal scratch']
  #allocation2 [shape = 's32[1]{0}', space=sflag, size = 0x4, scoped, tag = 'scoped memory for tpu_custom_call.1']
  #allocation3 [shape = 'u8[512]{0}', space=smem, size = 0x200, scoped, tag = 'prefetched SMEM operand 0']
  %s0 = inlined_call_operand.vmem [shape: f32[2], index: 0, kind: input, shape index: {}]
  %s1 = inlined_call_operand.vmem [shape: f32[8,1024], index: 1, kind: input, shape index: {}]
  %s2 = inlined_call_operand.hbm [shape: f32[1024,128], index: 2, kind: input, shape index: {}]
  %s3 = inlined_call_operand.vmem [shape: f32[1,128], index: 3, kind: input, shape index: {}]
  %s4 = inlined_call_operand.vmem [shape: f32[128,2], index: 4, kind: input, shape index: {}]
  %s5 = inlined_call_operand.vmem [shape: f32[1,2], index: 5, kind: input, shape index: {}]
  %s6 = inlined_call_operand.vmem [shape: f32[2,8], index: 6, kind: input, shape index: {}]
  %s7 = inlined_call_operand.vmem [shape: f32[1,8], index: 7, kind: input, shape index: {}]
  %s8 = inlined_call_operand.hbm [shape: f32[8,8], index: 8, kind: output, shape index: {0}]
  %s9 = inlined_call_operand.vmem [shape: f32[8,2], index: 9, kind: output, shape index: {1}]
  %10 = xla_tuple %s8, %s9
  %s11 = sld [smem:[#allocation0]]
  $region50: #{tpu_custom_call.1} parent=0
    _
  %s13 = ssub.s32 1, %s11
  %s14 = scalar_select 0, %s13, %s11
  %s15 = sshll.u32 %s0, 4
  %s16 = int_to_ptr.vmem [resolvable:$true] %s15
  %18 = dma.vmem_to_smem %s16, 16, [#allocation3], [#allocation2]
  %19 = dma.done [#allocation2], 16
  %20 = sfence
  $region1: #{tpu_custom_call.1} parent=0
    #allocation4 [shape = 'u8[524288]{0}', space=vmem, size = 0x80000, scoped, tag = 'input window, operand 2, single buffered']
    #allocation5 [shape = 's32[1]{0}', space=sflag, size = 0x4, scoped, tag = 'scoped memory for tpu_custom_call.1']
    #allocation6 [shape = 's32[1]{0}', space=sflag, size = 0x4, scoped, tag = 'scoped memory for tpu_custom_call.1']
    #allocation7 [shape = 'u8[4096]{0}', space=vmem, size = 0x1000, scoped, tag = 'output window, operand 0, single buffered']
    %21 = vsyncpa [#allocation5], 0
    %22 = vsyncpa [#allocation6], 0
    // Predicated region
    $region2: #{tpu_custom_call.1} parent=1 // pred_check
      _
    $region3: #{tpu_custom_call.1} parent=1 // pred_check_branch
      %24 = sbr.rel (0) target = $region5
    $region4: #{tpu_custom_call.1} parent=1 // pred_region
      _
    $region5: #{tpu_custom_call.1} parent=1 // pred_fallthru
      _
    // Predicated region
    $region6: #{tpu_custom_call.1} parent=1 // pred_check
      _
    $region7: #{tpu_custom_call.1} parent=1 // pred_check_branch
      %26 = sbr.rel (0) target = $region9
    $region8: #{tpu_custom_call.1} parent=1 // pred_region
      %s28 = ssub.s32 16384, 16384
      %29 = vsyncadd [#allocation5], %s28
      %s30 = sshll.u32 [#allocation4], 4
      %s31 = int_to_ptr.vmem [resolvable:$true] %s30
      %36 = dma.hbm_to_vmem [thread:$0]  %s2, 16384, %s31, [#allocation5], 128, 128, 8
    $region9: #{tpu_custom_call.1} parent=1 // pred_fallthru
      _
    // Predicated region
    $region10: #{tpu_custom_call.1} parent=1 // pred_check
      _
    $region11: #{tpu_custom_call.1} parent=1 // pred_check_branch
      %38 = sbr.rel (0) target = $region13
    $region12: #{tpu_custom_call.1} parent=1 // pred_region
      _
    $region13: #{tpu_custom_call.1} parent=1 // pred_fallthru
      _
    // Predicated region
    $region14: #{tpu_custom_call.1} parent=1 // pred_check
      _
    $region15: #{tpu_custom_call.1} parent=1 // pred_check_branch
      %40 = sbr.rel (0) target = $region17
    $region16: #{tpu_custom_call.1} parent=1 // pred_region
      _
    $region17: #{tpu_custom_call.1} parent=1 // pred_fallthru
      _
    // Predicated region
    $region18: #{tpu_custom_call.1} parent=1 // pred_check
      _
    $region19: #{tpu_custom_call.1} parent=1 // pred_check_branch
      %42 = sbr.rel (0) target = $region21
    $region20: #{tpu_custom_call.1} parent=1 // pred_region
      _
    $region21: #{tpu_custom_call.1} parent=1 // pred_fallthru
      _
    // Predicated region
    $region22: #{tpu_custom_call.1} parent=1 // pred_check
      _
    $region23: #{tpu_custom_call.1} parent=1 // pred_check_branch
      %44 = sbr.rel (0) target = $region25
    $region24: #{tpu_custom_call.1} parent=1 // pred_region
      _
    $region25: #{tpu_custom_call.1} parent=1 // pred_fallthru
      _
    // Predicated region
    $region26: #{tpu_custom_call.1} parent=1 // pred_check
      _
    $region27: #{tpu_custom_call.1} parent=1 // pred_check_branch
      %46 = sbr.rel (0) target = $region29
    $region28: #{tpu_custom_call.1} parent=1 // pred_region
      _
    $region29: #{tpu_custom_call.1} parent=1 // pred_fallthru
      _
    // Predicated region
    $region30: #{tpu_custom_call.1} parent=1 // pred_check
      _
    $region31: #{tpu_custom_call.1} parent=1 // pred_check_branch
      %48 = sbr.rel (0) target = $region33
    $region32: #{tpu_custom_call.1} parent=1 // pred_region
      %49 = dma.done [#allocation5], 16384
    $region33: #{tpu_custom_call.1} parent=1 // pred_fallthru
      _
    %s50 = sld [smem:[#allocation3]]
    %s51 = sld [smem:[#allocation3 + $0x1]]
    %v52 = vld [vmem:[%s1] sm:$0xff]
    %v53 = vld [vmem:[%s1 + $0x8] sm:$0xff]
    %v54 = vld [vmem:[%s1 + $0x10] sm:$0xff]
    %v55 = vld [vmem:[%s1 + $0x18] sm:$0xff]
    %v56 = vld [vmem:[%s1 + $0x20] sm:$0xff]
    %v57 = vld [vmem:[%s1 + $0x28] sm:$0xff]
    %v58 = vld [vmem:[%s1 + $0x30] sm:$0xff]
    %v59 = vld [vmem:[%s1 + $0x38] sm:$0xff]
    %v60 = vld [vmem:[#allocation4] sm:$0xff]
    %v61 = vld [vmem:[#allocation4 + $0x8] sm:$0xff]
    %v62 = vld [vmem:[#allocation4 + $0x10] sm:$0xff]
    %v63 = vld [vmem:[#allocation4 + $0x18] sm:$0xff]
    %v64 = vld [vmem:[#allocation4 + $0x20] sm:$0xff]
    %v65 = vld [vmem:[#allocation4 + $0x28] sm:$0xff]
    %v66 = vld [vmem:[#allocation4 + $0x30] sm:$0xff]
    %v67 = vld [vmem:[#allocation4 + $0x38] sm:$0xff]
    %v68 = vld [vmem:[#allocation4 + $0x40] sm:$0xff]
    %v69 = vld [vmem:[#allocation4 + $0x48] sm:$0xff]
    %v70 = vld [vmem:[#allocation4 + $0x50] sm:$0xff]
    %v71 = vld [vmem:[#allocation4 + $0x58] sm:$0xff]
    %v72 = vld [vmem:[#allocation4 + $0x60] sm:$0xff]
    %v73 = vld [vmem:[#allocation4 + $0x68] sm:$0xff]
    %v74 = vld [vmem:[#allocation4 + $0x70] sm:$0xff]
    %v75 = vld [vmem:[#allocation4 + $0x78] sm:$0xff]
    %v76 = vld [vmem:[#allocation4 + $0x80] sm:$0xff]
    %v77 = vld [vmem:[#allocation4 + $0x88] sm:$0xff]
    %v78 = vld [vmem:[#allocation4 + $0x90] sm:$0xff]
    %v79 = vld [vmem:[#allocation4 + $0x98] sm:$0xff]
    %v80 = vld [vmem:[#allocation4 + $0xa0] sm:$0xff]
    %v81 = vld [vmem:[#allocation4 + $0xa8] sm:$0xff]
    %v82 = vld [vmem:[#allocation4 + $0xb0] sm:$0xff]
    %v83 = vld [vmem:[#allocation4 + $0xb8] sm:$0xff]
    %v84 = vld [vmem:[#allocation4 + $0xc0] sm:$0xff]
    %v85 = vld [vmem:[#allocation4 + $0xc8] sm:$0xff]
    %v86 = vld [vmem:[#allocation4 + $0xd0] sm:$0xff]
    %v87 = vld [vmem:[#allocation4 + $0xd8] sm:$0xff]
    %v88 = vld [vmem:[#allocation4 + $0xe0] sm:$0xff]
    %v89 = vld [vmem:[#allocation4 + $0xe8] sm:$0xff]
    %v90 = vld [vmem:[#allocation4 + $0xf0] sm:$0xff]
    %v91 = vld [vmem:[#allocation4 + $0xf8] sm:$0xff]
    %v92 = vld [vmem:[#allocation4 + $0x100] sm:$0xff]
    %v93 = vld [vmem:[#allocation4 + $0x108] sm:$0xff]
    %v94 = vld [vmem:[#allocation4 + $0x110] sm:$0xff]
    %v95 = vld [vmem:[#allocation4 + $0x118] sm:$0xff]
    %v96 = vld [vmem:[#allocation4 + $0x120] sm:$0xff]
    %v97 = vld [vmem:[#allocation4 + $0x128] sm:$0xff]
    %v98 = vld [vmem:[#allocation4 + $0x130] sm:$0xff]
    %v99 = vld [vmem:[#allocation4 + $0x138] sm:$0xff]
    %v100 = vld [vmem:[#allocation4 + $0x140] sm:$0xff]
    %v101 = vld [vmem:[#allocation4 + $0x148] sm:$0xff]
    %v102 = vld [vmem:[#allocation4 + $0x150] sm:$0xff]
    %v103 = vld [vmem:[#allocation4 + $0x158] sm:$0xff]
    %v104 = vld [vmem:[#allocation4 + $0x160] sm:$0xff]
    %v105 = vld [vmem:[#allocation4 + $0x168] sm:$0xff]
    %v106 = vld [vmem:[#allocation4 + $0x170] sm:$0xff]
    %v107 = vld [vmem:[#allocation4 + $0x178] sm:$0xff]
    %v108 = vld [vmem:[#allocation4 + $0x180] sm:$0xff]
    %v109 = vld [vmem:[#allocation4 + $0x188] sm:$0xff]
    %v110 = vld [vmem:[#allocation4 + $0x190] sm:$0xff]
    %v111 = vld [vmem:[#allocation4 + $0x198] sm:$0xff]
    %v112 = vld [vmem:[#allocation4 + $0x1a0] sm:$0xff]
    %v113 = vld [vmem:[#allocation4 + $0x1a8] sm:$0xff]
    %v114 = vld [vmem:[#allocation4 + $0x1b0] sm:$0xff]
    %v115 = vld [vmem:[#allocation4 + $0x1b8] sm:$0xff]
    %v116 = vld [vmem:[#allocation4 + $0x1c0] sm:$0xff]
    %v117 = vld [vmem:[#allocation4 + $0x1c8] sm:$0xff]
    %v118 = vld [vmem:[#allocation4 + $0x1d0] sm:$0xff]
    %v119 = vld [vmem:[#allocation4 + $0x1d8] sm:$0xff]
    %v120 = vld [vmem:[#allocation4 + $0x1e0] sm:$0xff]
    %v121 = vld [vmem:[#allocation4 + $0x1e8] sm:$0xff]
    %v122 = vld [vmem:[#allocation4 + $0x1f0] sm:$0xff]
    %v123 = vld [vmem:[#allocation4 + $0x1f8] sm:$0xff]
    %v124 = vld [vmem:[#allocation4 + $0x200] sm:$0xff]
    %v125 = vld [vmem:[#allocation4 + $0x208] sm:$0xff]
    %v126 = vld [vmem:[#allocation4 + $0x210] sm:$0xff]
    %v127 = vld [vmem:[#allocation4 + $0x218] sm:$0xff]
    %v128 = vld [vmem:[#allocation4 + $0x220] sm:$0xff]
    %v129 = vld [vmem:[#allocation4 + $0x228] sm:$0xff]
    %v130 = vld [vmem:[#allocation4 + $0x230] sm:$0xff]
    %v131 = vld [vmem:[#allocation4 + $0x238] sm:$0xff]
    %v132 = vld [vmem:[#allocation4 + $0x240] sm:$0xff]
    %v133 = vld [vmem:[#allocation4 + $0x248] sm:$0xff]
    %v134 = vld [vmem:[#allocation4 + $0x250] sm:$0xff]
    %v135 = vld [vmem:[#allocation4 + $0x258] sm:$0xff]
    %v136 = vld [vmem:[#allocation4 + $0x260] sm:$0xff]
    %v137 = vld [vmem:[#allocation4 + $0x268] sm:$0xff]
    %v138 = vld [vmem:[#allocation4 + $0x270] sm:$0xff]
    %v139 = vld [vmem:[#allocation4 + $0x278] sm:$0xff]
    %v140 = vld [vmem:[#allocation4 + $0x280] sm:$0xff]
    %v141 = vld [vmem:[#allocation4 + $0x288] sm:$0xff]
    %v142 = vld [vmem:[#allocation4 + $0x290] sm:$0xff]
    %v143 = vld [vmem:[#allocation4 + $0x298] sm:$0xff]
    %v144 = vld [vmem:[#allocation4 + $0x2a0] sm:$0xff]
    %v145 = vld [vmem:[#allocation4 + $0x2a8] sm:$0xff]
    %v146 = vld [vmem:[#allocation4 + $0x2b0] sm:$0xff]
    %v147 = vld [vmem:[#allocation4 + $0x2b8] sm:$0xff]
    %v148 = vld [vmem:[#allocation4 + $0x2c0] sm:$0xff]
    %v149 = vld [vmem:[#allocation4 + $0x2c8] sm:$0xff]
    %v150 = vld [vmem:[#allocation4 + $0x2d0] sm:$0xff]
    %v151 = vld [vmem:[#allocation4 + $0x2d8] sm:$0xff]
    %v152 = vld [vmem:[#allocation4 + $0x2e0] sm:$0xff]
    %v153 = vld [vmem:[#allocation4 + $0x2e8] sm:$0xff]
    %v154 = vld [vmem:[#allocation4 + $0x2f0] sm:$0xff]
    %v155 = vld [vmem:[#allocation4 + $0x2f8] sm:$0xff]
    %v156 = vld [vmem:[#allocation4 + $0x300] sm:$0xff]
    %v157 = vld [vmem:[#allocation4 + $0x308] sm:$0xff]
    %v158 = vld [vmem:[#allocation4 + $0x310] sm:$0xff]
    %v159 = vld [vmem:[#allocation4 + $0x318] sm:$0xff]
    %v160 = vld [vmem:[#allocation4 + $0x320] sm:$0xff]
    %v161 = vld [vmem:[#allocation4 + $0x328] sm:$0xff]
    %v162 = vld [vmem:[#allocation4 + $0x330] sm:$0xff]
    %v163 = vld [vmem:[#allocation4 + $0x338] sm:$0xff]
    %v164 = vld [vmem:[#allocation4 + $0x340] sm:$0xff]
    %v165 = vld [vmem:[#allocation4 + $0x348] sm:$0xff]
    %v166 = vld [vmem:[#allocation4 + $0x350] sm:$0xff]
    %v167 = vld [vmem:[#allocation4 + $0x358] sm:$0xff]
    %v168 = vld [vmem:[#allocation4 + $0x360] sm:$0xff]
    %v169 = vld [vmem:[#allocation4 + $0x368] sm:$0xff]
    %v170 = vld [vmem:[#allocation4 + $0x370] sm:$0xff]
    %v171 = vld [vmem:[#allocation4 + $0x378] sm:$0xff]
    %v172 = vld [vmem:[#allocation4 + $0x380] sm:$0xff]
    %v173 = vld [vmem:[#allocation4 + $0x388] sm:$0xff]
    %v174 = vld [vmem:[#allocation4 + $0x390] sm:$0xff]
    %v175 = vld [vmem:[#allocation4 + $0x398] sm:$0xff]
    %v176 = vld [vmem:[#allocation4 + $0x3a0] sm:$0xff]
    %v177 = vld [vmem:[#allocation4 + $0x3a8] sm:$0xff]
    %v178 = vld [vmem:[#allocation4 + $0x3b0] sm:$0xff]
    %v179 = vld [vmem:[#allocation4 + $0x3b8] sm:$0xff]
    %v180 = vld [vmem:[#allocation4 + $0x3c0] sm:$0xff]
    %v181 = vld [vmem:[#allocation4 + $0x3c8] sm:$0xff]
    %v182 = vld [vmem:[#allocation4 + $0x3d0] sm:$0xff]
    %v183 = vld [vmem:[#allocation4 + $0x3d8] sm:$0xff]
    %v184 = vld [vmem:[#allocation4 + $0x3e0] sm:$0xff]
    %v185 = vld [vmem:[#allocation4 + $0x3e8] sm:$0xff]
    %v186 = vld [vmem:[#allocation4 + $0x3f0] sm:$0xff]
    %v187 = vld [vmem:[#allocation4 + $0x3f8] sm:$0xff]
    %v188 = vld [vmem:[%s3] sm:$0x1]
    %v190 = vlaneseq
    %v191 = vshrl.u32 %v190, 7
    %v192 = vsub.s32 0, %v191
    %v193 = vrot.slane %v188, %v192
    %195 = vmatprep.subr.mxu0 0.0
    %196 = vmatpush1.msra.mxu0 %v60
    %197 = vmatprep.subr.mxu0 0.0
    %198 = vmatpush1.msra.mxu0 %v61
    %199 = vmatprep.subr.mxu0 0.0
    %200 = vmatpush1.msra.mxu0 %v62
    %201 = vmatprep.subr.mxu0 0.0
    %202 = vmatpush1.msra.mxu0 %v63
    %203 = vmatprep.subr.mxu0 0.0
    %204 = vmatpush1.msra.mxu0 %v64
    %205 = vmatprep.subr.mxu0 0.0
    %206 = vmatpush1.msra.mxu0 %v65
    %207 = vmatprep.subr.mxu0 0.0
    %208 = vmatpush1.msra.mxu0 %v66
    %209 = vmatprep.subr.mxu0 0.0
    %210 = vmatpush1.msra.mxu0 %v67
    %211 = vmatprep.subr.mxu0 0.0
    %212 = vmatpush1.msra.mxu0 %v68
    %213 = vmatprep.subr.mxu0 0.0
    %214 = vmatpush1.msra.mxu0 %v69
    %215 = vmatprep.subr.mxu0 0.0
    %216 = vmatpush1.msra.mxu0 %v70
    %217 = vmatprep.subr.mxu0 0.0
    %218 = vmatpush1.msra.mxu0 %v71
    %219 = vmatprep.subr.mxu0 0.0
    %220 = vmatpush1.msra.mxu0 %v72
    %221 = vmatprep.subr.mxu0 0.0
    %222 = vmatpush1.msra.mxu0 %v73
    %223 = vmatprep.subr.mxu0 0.0
    %224 = vmatpush1.msra.mxu0 %v74
    %225 = vmatprep.subr.mxu0 0.0
    %226 = vmatpush1.msra.mxu0 %v75
    %227 = vmatprep.subr.mxu0 0.0
    %228 = vmatpush1.msra.mxu0 %v76
    %229 = vmatprep.subr.mxu0 0.0
    %230 = vmatpush1.msra.mxu0 %v77
    %231 = vmatprep.subr.mxu0 0.0
    %232 = vmatpush1.msra.mxu0 %v78
    %233 = vmatprep.subr.mxu0 0.0
    %234 = vmatpush1.msra.mxu0 %v79
    %235 = vmatprep.subr.mxu0 0.0
    %236 = vmatpush1.msra.mxu0 %v80
    %237 = vmatprep.subr.mxu0 0.0
    %238 = vmatpush1.msra.mxu0 %v81
    %239 = vmatprep.subr.mxu0 0.0
    %240 = vmatpush1.msra.mxu0 %v82
    %241 = vmatprep.subr.mxu0 0.0
    %242 = vmatpush1.msra.mxu0 %v83
    %243 = vmatprep.subr.mxu0 0.0
    %244 = vmatpush1.msra.mxu0 %v84
    %245 = vmatprep.subr.mxu0 0.0
    %246 = vmatpush1.msra.mxu0 %v85
    %247 = vmatprep.subr.mxu0 0.0
    %248 = vmatpush1.msra.mxu0 %v86
    %249 = vmatprep.subr.mxu0 0.0
    %250 = vmatpush1.msra.mxu0 %v87
    %251 = vmatprep.subr.mxu0 0.0
    %252 = vmatpush1.msra.mxu0 %v88
    %253 = vmatprep.subr.mxu0 0.0
    %254 = vmatpush1.msra.mxu0 %v89
    %255 = vmatprep.subr.mxu0 0.0
    %256 = vmatpush1.msra.mxu0 %v90
    %257 = vmatprep.subr.mxu0 0.0
    %258 = vmatpush1.msra.mxu0 %v91
    %259 = vmatprep.mubr.f32.mxu0 %v53
    %260 = vmatmul.mubr.f32.gmra.mrb[0].mxu0 %v52
    %v261 = vpop.f32.mrb[0].mxu0
    %v262 = vadd.f32 %v193, %v261
    %v263 = vpop.f32.mrb[0].mxu0
    %264 = vdwg.mxu0
    %265 = vmatprep.subr.mxu0 0.0
    %266 = vmatpush1.msra.mxu0 %v92
    %267 = vmatprep.subr.mxu0 0.0
    %268 = vmatpush1.msra.mxu0 %v93
    %269 = vmatprep.subr.mxu0 0.0
    %270 = vmatpush1.msra.mxu0 %v94
    %271 = vmatprep.subr.mxu0 0.0
    %272 = vmatpush1.msra.mxu0 %v95
    %273 = vmatprep.subr.mxu0 0.0
    %274 = vmatpush1.msra.mxu0 %v96
    %275 = vmatprep.subr.mxu0 0.0
    %276 = vmatpush1.msra.mxu0 %v97
    %277 = vmatprep.subr.mxu0 0.0
    %278 = vmatpush1.msra.mxu0 %v98
    %279 = vmatprep.subr.mxu0 0.0
    %280 = vmatpush1.msra.mxu0 %v99
    %281 = vmatprep.subr.mxu0 0.0
    %282 = vmatpush1.msra.mxu0 %v100
    %283 = vmatprep.subr.mxu0 0.0
    %284 = vmatpush1.msra.mxu0 %v101
    %285 = vmatprep.subr.mxu0 0.0
    %286 = vmatpush1.msra.mxu0 %v102
    %287 = vmatprep.subr.mxu0 0.0
    %288 = vmatpush1.msra.mxu0 %v103
    %289 = vmatprep.subr.mxu0 0.0
    %290 = vmatpush1.msra.mxu0 %v104
    %291 = vmatprep.subr.mxu0 0.0
    %292 = vmatpush1.msra.mxu0 %v105
    %293 = vmatprep.subr.mxu0 0.0
    %294 = vmatpush1.msra.mxu0 %v106
    %295 = vmatprep.subr.mxu0 0.0
    %296 = vmatpush1.msra.mxu0 %v107
    %297 = vmatprep.subr.mxu0 0.0
    %298 = vmatpush1.msra.mxu0 %v108
    %299 = vmatprep.subr.mxu0 0.0
    %300 = vmatpush1.msra.mxu0 %v109
    %301 = vmatprep.subr.mxu0 0.0
    %302 = vmatpush1.msra.mxu0 %v110
    %303 = vmatprep.subr.mxu0 0.0
    %304 = vmatpush1.msra.mxu0 %v111
    %305 = vmatprep.subr.mxu0 0.0
    %306 = vmatpush1.msra.mxu0 %v112
    %307 = vmatprep.subr.mxu0 0.0
    %308 = vmatpush1.msra.mxu0 %v113
    %309 = vmatprep.subr.mxu0 0.0
    %310 = vmatpush1.msra.mxu0 %v114
    %311 = vmatprep.subr.mxu0 0.0
    %312 = vmatpush1.msra.mxu0 %v115
    %313 = vmatprep.subr.mxu0 0.0
    %314 = vmatpush1.msra.mxu0 %v116
    %315 = vmatprep.subr.mxu0 0.0
    %316 = vmatpush1.msra.mxu0 %v117
    %317 = vmatprep.subr.mxu0 0.0
    %318 = vmatpush1.msra.mxu0 %v118
    %319 = vmatprep.subr.mxu0 0.0
    %320 = vmatpush1.msra.mxu0 %v119
    %321 = vmatprep.subr.mxu0 0.0
    %322 = vmatpush1.msra.mxu0 %v120
    %323 = vmatprep.subr.mxu0 0.0
    %324 = vmatpush1.msra.mxu0 %v121
    %325 = vmatprep.subr.mxu0 0.0
    %326 = vmatpush1.msra.mxu0 %v122
    %327 = vmatprep.subr.mxu0 0.0
    %328 = vmatpush1.msra.mxu0 %v123
    %329 = vmatprep.mubr.f32.mxu0 %v55
    %330 = vmatmul.mubr.f32.gmra.mrb[0].mxu0 %v54
    %v331 = vpop.f32.mrb[0].mxu0
    %v332 = vadd.f32 %v262, %v331
    %v333 = vpop.f32.mrb[0].mxu0
    %334 = vdwg.mxu0
    %335 = vmatprep.subr.mxu0 0.0
    %336 = vmatpush1.msra.mxu0 %v124
    %337 = vmatprep.subr.mxu0 0.0
    %338 = vmatpush1.msra.mxu0 %v125
    %339 = vmatprep.subr.mxu0 0.0
    %340 = vmatpush1.msra.mxu0 %v126
    %341 = vmatprep.subr.mxu0 0.0
    %342 = vmatpush1.msra.mxu0 %v127
    %343 = vmatprep.subr.mxu0 0.0
    %344 = vmatpush1.msra.mxu0 %v128
    %345 = vmatprep.subr.mxu0 0.0
    %346 = vmatpush1.msra.mxu0 %v129
    %347 = vmatprep.subr.mxu0 0.0
    %348 = vmatpush1.msra.mxu0 %v130
    %349 = vmatprep.subr.mxu0 0.0
    %350 = vmatpush1.msra.mxu0 %v131
    %351 = vmatprep.subr.mxu0 0.0
    %352 = vmatpush1.msra.mxu0 %v132
    %353 = vmatprep.subr.mxu0 0.0
    %354 = vmatpush1.msra.mxu0 %v133
    %355 = vmatprep.subr.mxu0 0.0
    %356 = vmatpush1.msra.mxu0 %v134
    %357 = vmatprep.subr.mxu0 0.0
    %358 = vmatpush1.msra.mxu0 %v135
    %359 = vmatprep.subr.mxu0 0.0
    %360 = vmatpush1.msra.mxu0 %v136
    %361 = vmatprep.subr.mxu0 0.0
    %362 = vmatpush1.msra.mxu0 %v137
    %363 = vmatprep.subr.mxu0 0.0
    %364 = vmatpush1.msra.mxu0 %v138
    %365 = vmatprep.subr.mxu0 0.0
    %366 = vmatpush1.msra.mxu0 %v139
    %367 = vmatprep.subr.mxu0 0.0
    %368 = vmatpush1.msra.mxu0 %v140
    %369 = vmatprep.subr.mxu0 0.0
    %370 = vmatpush1.msra.mxu0 %v141
    %371 = vmatprep.subr.mxu0 0.0
    %372 = vmatpush1.msra.mxu0 %v142
    %373 = vmatprep.subr.mxu0 0.0
    %374 = vmatpush1.msra.mxu0 %v143
    %375 = vmatprep.subr.mxu0 0.0
    %376 = vmatpush1.msra.mxu0 %v144
    %377 = vmatprep.subr.mxu0 0.0
    %378 = vmatpush1.msra.mxu0 %v145
    %379 = vmatprep.subr.mxu0 0.0
    %380 = vmatpush1.msra.mxu0 %v146
    %381 = vmatprep.subr.mxu0 0.0
    %382 = vmatpush1.msra.mxu0 %v147
    %383 = vmatprep.subr.mxu0 0.0
    %384 = vmatpush1.msra.mxu0 %v148
    %385 = vmatprep.subr.mxu0 0.0
    %386 = vmatpush1.msra.mxu0 %v149
    %387 = vmatprep.subr.mxu0 0.0
    %388 = vmatpush1.msra.mxu0 %v150
    %389 = vmatprep.subr.mxu0 0.0
    %390 = vmatpush1.msra.mxu0 %v151
    %391 = vmatprep.subr.mxu0 0.0
    %392 = vmatpush1.msra.mxu0 %v152
    %393 = vmatprep.subr.mxu0 0.0
    %394 = vmatpush1.msra.mxu0 %v153
    %395 = vmatprep.subr.mxu0 0.0
    %396 = vmatpush1.msra.mxu0 %v154
    %397 = vmatprep.subr.mxu0 0.0
    %398 = vmatpush1.msra.mxu0 %v155
    %399 = vmatprep.mubr.f32.mxu0 %v57
    %400 = vmatmul.mubr.f32.gmra.mrb[0].mxu0 %v56
    %v401 = vpop.f32.mrb[0].mxu0
    %v402 = vadd.f32 %v332, %v401
    %v403 = vpop.f32.mrb[0].mxu0
    %404 = vdwg.mxu0
    %405 = vmatprep.subr.mxu0 0.0
    %406 = vmatpush1.msra.mxu0 %v156
    %407 = vmatprep.subr.mxu0 0.0
    %408 = vmatpush1.msra.mxu0 %v157
    %409 = vmatprep.subr.mxu0 0.0
    %410 = vmatpush1.msra.mxu0 %v158
    %411 = vmatprep.subr.mxu0 0.0
    %412 = vmatpush1.msra.mxu0 %v159
    %413 = vmatprep.subr.mxu0 0.0
    %414 = vmatpush1.msra.mxu0 %v160
    %415 = vmatprep.subr.mxu0 0.0
    %416 = vmatpush1.msra.mxu0 %v161
    %417 = vmatprep.subr.mxu0 0.0
    %418 = vmatpush1.msra.mxu0 %v162
    %419 = vmatprep.subr.mxu0 0.0
    %420 = vmatpush1.msra.mxu0 %v163
    %421 = vmatprep.subr.mxu0 0.0
    %422 = vmatpush1.msra.mxu0 %v164
    %423 = vmatprep.subr.mxu0 0.0
    %424 = vmatpush1.msra.mxu0 %v165
    %425 = vmatprep.subr.mxu0 0.0
    %426 = vmatpush1.msra.mxu0 %v166
    %427 = vmatprep.subr.mxu0 0.0
    %428 = vmatpush1.msra.mxu0 %v167
    %429 = vmatprep.subr.mxu0 0.0
    %430 = vmatpush1.msra.mxu0 %v168
    %431 = vmatprep.subr.mxu0 0.0
    %432 = vmatpush1.msra.mxu0 %v169
    %433 = vmatprep.subr.mxu0 0.0
    %434 = vmatpush1.msra.mxu0 %v170
    %435 = vmatprep.subr.mxu0 0.0
    %436 = vmatpush1.msra.mxu0 %v171
    %437 = vmatprep.subr.mxu0 0.0
    %438 = vmatpush1.msra.mxu0 %v172
    %439 = vmatprep.subr.mxu0 0.0
    %440 = vmatpush1.msra.mxu0 %v173
    %441 = vmatprep.subr.mxu0 0.0
    %442 = vmatpush1.msra.mxu0 %v174
    %443 = vmatprep.subr.mxu0 0.0
    %444 = vmatpush1.msra.mxu0 %v175
    %445 = vmatprep.subr.mxu0 0.0
    %446 = vmatpush1.msra.mxu0 %v176
    %447 = vmatprep.subr.mxu0 0.0
    %448 = vmatpush1.msra.mxu0 %v177
    %449 = vmatprep.subr.mxu0 0.0
    %450 = vmatpush1.msra.mxu0 %v178
    %451 = vmatprep.subr.mxu0 0.0
    %452 = vmatpush1.msra.mxu0 %v179
    %453 = vmatprep.subr.mxu0 0.0
    %454 = vmatpush1.msra.mxu0 %v180
    %455 = vmatprep.subr.mxu0 0.0
    %456 = vmatpush1.msra.mxu0 %v181
    %457 = vmatprep.subr.mxu0 0.0
    %458 = vmatpush1.msra.mxu0 %v182
    %459 = vmatprep.subr.mxu0 0.0
    %460 = vmatpush1.msra.mxu0 %v183
    %461 = vmatprep.subr.mxu0 0.0
    %462 = vmatpush1.msra.mxu0 %v184
    %463 = vmatprep.subr.mxu0 0.0
    %464 = vmatpush1.msra.mxu0 %v185
    %465 = vmatprep.subr.mxu0 0.0
    %466 = vmatpush1.msra.mxu0 %v186
    %467 = vmatprep.subr.mxu0 0.0
    %468 = vmatpush1.msra.mxu0 %v187
    %469 = vmatprep.mubr.f32.mxu0 %v59
    %470 = vmatmul.mubr.f32.gmra.mrb[0].mxu0 %v58
    %v471 = vpop.f32.mrb[0].mxu0
    %v472 = vadd.f32 %v402, %v471
    %v473 = vpop.f32.mrb[0].mxu0
    %474 = vdwg.mxu0
    %vm475 = vcmp.gt.f32.partialorder %v472, 0.0
    %v476 = vstv %s50
    %v477 = vmul.f32 %v476, %v472
    %v478 = vsel %vm475, %v472, %v477
    %v479 = vld [vmem:[%s4] sm:$0xff]
    %v480 = vld [vmem:[%s4 + $0x8] sm:$0xff]
    %v481 = vld [vmem:[%s4 + $0x10] sm:$0xff]
    %v482 = vld [vmem:[%s4 + $0x18] sm:$0xff]
    %v483 = vld [vmem:[%s4 + $0x20] sm:$0xff]
    %v484 = vld [vmem:[%s4 + $0x28] sm:$0xff]
    %v485 = vld [vmem:[%s4 + $0x30] sm:$0xff]
    %v486 = vld [vmem:[%s4 + $0x38] sm:$0xff]
    %v487 = vld [vmem:[%s4 + $0x40] sm:$0xff]
    %v488 = vld [vmem:[%s4 + $0x48] sm:$0xff]
    %v489 = vld [vmem:[%s4 + $0x50] sm:$0xff]
    %v490 = vld [vmem:[%s4 + $0x58] sm:$0xff]
    %v491 = vld [vmem:[%s4 + $0x60] sm:$0xff]
    %v492 = vld [vmem:[%s4 + $0x68] sm:$0xff]
    %v493 = vld [vmem:[%s4 + $0x70] sm:$0xff]
    %v494 = vld [vmem:[%s4 + $0x78] sm:$0xff]
    %v495 = vld [vmem:[%s5] sm:$0x1]
    %v497 = vlaneseq
    %v498 = vshrl.u32 %v497, 7
    %v499 = vsub.s32 0, %v498
    %v500 = vrot.slane %v495, %v499
    %502 = vmatprep.subr.mxu0 0.0
    %503 = vmatpush1.msra.mxu0 %v479
    %504 = vmatprep.subr.mxu0 0.0
    %505 = vmatpush1.msra.mxu0 %v480
    %506 = vmatprep.subr.mxu0 0.0
    %507 = vmatpush1.msra.mxu0 %v481
    %508 = vmatprep.subr.mxu0 0.0
    %509 = vmatpush1.msra.mxu0 %v482
    %510 = vmatprep.subr.mxu0 0.0
    %511 = vmatpush1.msra.mxu0 %v483
    %512 = vmatprep.subr.mxu0 0.0
    %513 = vmatpush1.msra.mxu0 %v484
    %514 = vmatprep.subr.mxu0 0.0
    %515 = vmatpush1.msra.mxu0 %v485
    %516 = vmatprep.subr.mxu0 0.0
    %517 = vmatpush1.msra.mxu0 %v486
    %518 = vmatprep.subr.mxu0 0.0
    %519 = vmatpush1.msra.mxu0 %v487
    %520 = vmatprep.subr.mxu0 0.0
    %521 = vmatpush1.msra.mxu0 %v488
    %522 = vmatprep.subr.mxu0 0.0
    %523 = vmatpush1.msra.mxu0 %v489
    %524 = vmatprep.subr.mxu0 0.0
    %525 = vmatpush1.msra.mxu0 %v490
    %526 = vmatprep.subr.mxu0 0.0
    %527 = vmatpush1.msra.mxu0 %v491
    %528 = vmatprep.subr.mxu0 0.0
    %529 = vmatpush1.msra.mxu0 %v492
    %530 = vmatprep.subr.mxu0 0.0
    %531 = vmatpush1.msra.mxu0 %v493
    %532 = vmatprep.subr.mxu0 0.0
    %533 = vmatpush1.msra.mxu0 %v494
    %534 = vmatprep.subr.mxu0 0.0
    %535 = vmatpush1.msra.mxu0 0.0
    %536 = vmatprep.subr.mxu0 0.0
    %537 = vmatpush1.msra.mxu0 0.0
    %538 = vmatprep.subr.mxu0 0.0
    %539 = vmatpush1.msra.mxu0 0.0
    %540 = vmatprep.subr.mxu0 0.0
    %541 = vmatpush1.msra.mxu0 0.0
    %542 = vmatprep.subr.mxu0 0.0
    %543 = vmatpush1.msra.mxu0 0.0
    %544 = vmatprep.subr.mxu0 0.0
    %545 = vmatpush1.msra.mxu0 0.0
    %546 = vmatprep.subr.mxu0 0.0
    %547 = vmatpush1.msra.mxu0 0.0
    %548 = vmatprep.subr.mxu0 0.0
    %549 = vmatpush1.msra.mxu0 0.0
    %550 = vmatprep.subr.mxu0 0.0
    %551 = vmatpush1.msra.mxu0 0.0
    %552 = vmatprep.subr.mxu0 0.0
    %553 = vmatpush1.msra.mxu0 0.0
    %554 = vmatprep.subr.mxu0 0.0
    %555 = vmatpush1.msra.mxu0 0.0
    %556 = vmatprep.subr.mxu0 0.0
    %557 = vmatpush1.msra.mxu0 0.0
    %558 = vmatprep.subr.mxu0 0.0
    %559 = vmatpush1.msra.mxu0 0.0
    %560 = vmatprep.subr.mxu0 0.0
    %561 = vmatpush1.msra.mxu0 0.0
    %562 = vmatprep.subr.mxu0 0.0
    %563 = vmatpush1.msra.mxu0 0.0
    %564 = vmatprep.subr.mxu0 0.0
    %565 = vmatpush1.msra.mxu0 0.0
    %566 = vmatprep.mubr.f32.mxu0 0.0
    %567 = vmatmul.mubr.f32.gmra.mrb[0].mxu0 %v478
    %v568 = vpop.f32.mrb[0].mxu0
    %v569 = vadd.f32 %v500, %v568
    %v570 = vpop.f32.mrb[0].mxu0
    %571 = vdwg.mxu0
    %vm572 = vcmask 15360
    %573 = vst.msk [vmem:[%s9] sm:$0xff] %vm572, %v569
    %vm574 = vcmp.gt.f32.partialorder %v569, 0.0
    %v575 = vstv %s51
    %v576 = vmul.f32 %v575, %v569
    %v577 = vsel %vm574, %v569, %v576
    %v578 = vld [vmem:[%s6] sm:$0x3]
    %v579 = vld [vmem:[%s7] sm:$0x1]
    %v581 = vlaneseq
    %v582 = vshrl.u32 %v581, 7
    %v583 = vsub.s32 0, %v582
    %v584 = vrot.slane %v579, %v583
    %v587 = vsel %vm572, %v577, 0
    %vm589 = vcmask 1041408
    %v591 = vsel %vm589, %v578, 0
    %593 = vmatprep.subr.mxu0 0.0
    %594 = vmatpush1.msra.mxu0 %v591
    %595 = vmatprep.subr.mxu0 0.0
    %596 = vmatpush1.msra.mxu0 0.0
    %597 = vmatprep.subr.mxu0 0.0
    %598 = vmatpush1.msra.mxu0 0.0
    %599 = vmatprep.subr.mxu0 0.0
    %600 = vmatpush1.msra.mxu0 0.0
    %601 = vmatprep.subr.mxu0 0.0
    %602 = vmatpush1.msra.mxu0 0.0
    %603 = vmatprep.subr.mxu0 0.0
    %604 = vmatpush1.msra.mxu0 0.0
    %605 = vmatprep.subr.mxu0 0.0
    %606 = vmatpush1.msra.mxu0 0.0
    %607 = vmatprep.subr.mxu0 0.0
    %608 = vmatpush1.msra.mxu0 0.0
    %609 = vmatprep.subr.mxu0 0.0
    %610 = vmatpush1.msra.mxu0 0.0
    %611 = vmatprep.subr.mxu0 0.0
    %612 = vmatpush1.msra.mxu0 0.0
    %613 = vmatprep.subr.mxu0 0.0
    %614 = vmatpush1.msra.mxu0 0.0
    %615 = vmatprep.subr.mxu0 0.0
    %616 = vmatpush1.msra.mxu0 0.0
    %617 = vmatprep.subr.mxu0 0.0
    %618 = vmatpush1.msra.mxu0 0.0
    %619 = vmatprep.subr.mxu0 0.0
    %620 = vmatpush1.msra.mxu0 0.0
    %621 = vmatprep.subr.mxu0 0.0
    %622 = vmatpush1.msra.mxu0 0.0
    %623 = vmatprep.subr.mxu0 0.0
    %624 = vmatpush1.msra.mxu0 0.0
    %625 = vmatprep.subr.mxu0 0.0
    %626 = vmatpush1.msra.mxu0 0.0
    %627 = vmatprep.subr.mxu0 0.0
    %628 = vmatpush1.msra.mxu0 0.0
    %629 = vmatprep.subr.mxu0 0.0
    %630 = vmatpush1.msra.mxu0 0.0
    %631 = vmatprep.subr.mxu0 0.0
    %632 = vmatpush1.msra.mxu0 0.0
    %633 = vmatprep.subr.mxu0 0.0
    %634 = vmatpush1.msra.mxu0 0.0
    %635 = vmatprep.subr.mxu0 0.0
    %636 = vmatpush1.msra.mxu0 0.0
    %637 = vmatprep.subr.mxu0 0.0
    %638 = vmatpush1.msra.mxu0 0.0
    %639 = vmatprep.subr.mxu0 0.0
    %640 = vmatpush1.msra.mxu0 0.0
    %641 = vmatprep.subr.mxu0 0.0
    %642 = vmatpush1.msra.mxu0 0.0
    %643 = vmatprep.subr.mxu0 0.0
    %644 = vmatpush1.msra.mxu0 0.0
    %645 = vmatprep.subr.mxu0 0.0
    %646 = vmatpush1.msra.mxu0 0.0
    %647 = vmatprep.subr.mxu0 0.0
    %648 = vmatpush1.msra.mxu0 0.0
    %649 = vmatprep.subr.mxu0 0.0
    %650 = vmatpush1.msra.mxu0 0.0
    %651 = vmatprep.subr.mxu0 0.0
    %652 = vmatpush1.msra.mxu0 0.0
    %653 = vmatprep.subr.mxu0 0.0
    %654 = vmatpush1.msra.mxu0 0.0
    %655 = vmatprep.subr.mxu0 0.0
    %656 = vmatpush1.msra.mxu0 0.0
    %657 = vmatprep.mubr.f32.mxu0 0.0
    %658 = vmatmul.mubr.f32.gmra.mrb[0].mxu0 %v587
    %v659 = vpop.f32.mrb[0].mxu0
    %v660 = vadd.f32 %v584, %v659
    %v661 = vpop.f32.mrb[0].mxu0
    %662 = vdwg.mxu0
    %vm663 = vcmask 64512
    %v664 = vsel %vm663, %v660, -inf
    %665 = vmax.xlane.f32.xlu0 %v664
    %v666 = vpop.xlane.xlu0 %665
    %v667 = vsub.f32 %v660, %v666
    %v668 = vmul.f32 %v667, 1.442695
    %v669 = vpow.pop %v668
    %v670 = vsel %vm663, %v669, 0.0
    %671 = vadd.xlane.f32.xlu0 %v670
    %v672 = vpop.xlane.xlu0 %671
    %v673 = vlog2.pop %v672
    %v674 = vmul.f32 %v673, 0.6931472
    %v675 = vsub.f32 %v667, %v674
    %676 = vst.msk [vmem:[#allocation7] sm:$0xff] %vm663, %v675
    // Predicated region
    $region34: #{tpu_custom_call.1} parent=1 // pred_check
      _
    $region35: #{tpu_custom_call.1} parent=1 // pred_check_branch
      %678 = sbr.rel (0) target = $region37
    $region36: #{tpu_custom_call.1} parent=1 // pred_region
      %s680 = ssub.s32 128, 128
      %681 = vsyncadd [#allocation6], %s680
      %s683 = sshll.u32 [#allocation7], 4
      %s684 = int_to_ptr.vmem [resolvable:$true] %s683
      %686 = dma.vmem_to_hbm [thread:$0]  %s684, 128, %s8, [#allocation6]
    $region37: #{tpu_custom_call.1} parent=1 // pred_fallthru
      _
    // Predicated region
    $region38: #{tpu_custom_call.1} parent=1 // pred_check
      _
    $region39: #{tpu_custom_call.1} parent=1 // pred_check_branch
      %688 = sbr.rel (0) target = $region41
    $region40: #{tpu_custom_call.1} parent=1 // pred_region
      _
    $region41: #{tpu_custom_call.1} parent=1 // pred_fallthru
      _
    // Predicated region
    $region42: #{tpu_custom_call.1} parent=1 // pred_check
      _
    $region43: #{tpu_custom_call.1} parent=1 // pred_check_branch
      %690 = sbr.rel (0) target = $region45
    $region44: #{tpu_custom_call.1} parent=1 // pred_region
      %691 = dma.done [#allocation6], 128
    $region45: #{tpu_custom_call.1} parent=1 // pred_fallthru
      _
    // Predicated region
    $region46: #{tpu_custom_call.1} parent=1 // pred_check
      _
    $region47: #{tpu_custom_call.1} parent=1 // pred_check_branch
      %693 = sbr.rel (0) target = $region49
    $region48: #{tpu_custom_call.1} parent=1 // pred_region
      _
    $region49: #{tpu_custom_call.1} parent=1 // pred_fallthru
      _
    %694 = vsyncpa [#allocation5], 1
    %695 = vsyncpa [#allocation6], 1

</llo_original>
